<compile_context>
chip_gen: v6e
topology: v6e:2x2x1
jax: 0.10.0
libtpu: 0.0.40
codegen_flags: <defaults>
</compile_context>

<pallas_src>
import functools

import jax
import jax.numpy as jnp
import numpy as np
from jax import lax
from jax.experimental import pallas as pl
from jax.experimental.pallas import tpu as pltpu

_LANE = 128
_SUBLANE = 8
# Stay under the smallest default scoped-VMEM limit (v5e: 16 MiB) with margin.
_VMEM_TILE_BUDGET = 12 * 1024 * 1024


def _round_up(x, m):
    return (x + m - 1) // m * m


def _target_min_grid_steps():
    """>= 4 grid steps only on dual-TensorCore chips (v7x); 1 elsewhere."""
    try:
        kind = jax.devices()[0].device_kind.lower()
    except Exception:
        return 1
    return 4 if "v7" in kind else 1


def _pick_block_b(batch, requested, d1, d2):
    """Batch tile for batch >= 128: a multiple of 128 that fits the VMEM budget."""
    bb = max(_LANE, (min(requested, batch) // _LANE) * _LANE)

    def vmem_bytes(b):
        in_lanes = _round_up(d1, _LANE) + _round_up(d2, _LANE)
        # 2 pipeline buffers per stream (f32) + output tile (8-sublane padded).
        return 2 * 4 * b * in_lanes + 2 * 4 * _SUBLANE * b

    while bb > _LANE and vmem_bytes(bb) > _VMEM_TILE_BUDGET:
        bb -= _LANE

    min_steps = _target_min_grid_steps()
    while bb > _LANE and pl.cdiv(batch, bb) < min_steps:
        bb = max(_LANE, (bb // 2 // _LANE) * _LANE)
    return bb


def _moef_kernel(sim_ref, com_ref, wts_ref, wtc_ref, b_ref, out_ref):
    """One batch tile of the fused MoEF head (transposed orientation).

    z^T rows: [gate0, gate1, moe0, moe1, fc1, fc2, 0, 0]; columns = samples.
    out  rows: [y_pred, y_pred_1, y_pred_2];              columns = samples.
    """
    # Contract the feature dims: W^T[8, D] (.) act[bb, D]^T  ->  [8, bb].
    dn = (((1,), (1,)), ((), ()))
    zt = (lax.dot_general(wts_ref[...], sim_ref[...], dn,
                          preferred_element_type=jnp.float32)
          + lax.dot_general(wtc_ref[...], com_ref[...], dn,
                            preferred_element_type=jnp.float32)
          + b_ref[...])                                   # [8, bb] f32

    l0, l1 = zt[0:1, :], zt[1:2, :]                       # gate logits
    m0, m1 = zt[2:3, :], zt[3:4, :]                       # MOE experts

    # softmax([l0, l1]) == [sigmoid(l0 - l1), 1 - sigmoid(l0 - l1)]
    # => y = g0*m0 + (1-g0)*m1 = g0*(m0 - m1) + m1   (lane-wise, one exp)
    g0 = 1.0 / (1.0 + jnp.exp(l1 - l0))
    y = g0 * (m0 - m1) + m1                               # [1, bb]

    out_ref[0:1, :] = y.astype(out_ref.dtype)             # y_pred
    out_ref[1:3, :] = zt[4:6, :].astype(out_ref.dtype)    # y_pred_1, y_pred_2


@functools.partial(jax.jit, static_argnames=("block_b",))
def moef_forward(sim_out, com_out, packed_params, *, block_b=2048):
    """Runs the MoEF head. Returns (y_pred, y_pred_1, y_pred_2), each [B, 1]."""
    wt_sim, wt_com, bias_t = packed_params
    B, D1 = sim_out.shape
    Bc, D2 = com_out.shape
    assert B == Bc

    if B < _LANE:
        # Tiny batch: pad at most 7 rows so the single block is exact.
        # Large batches are never padded / re-materialised.
        b_pad = _round_up(B, _SUBLANE)
        if b_pad != B:
            pad = ((0, b_pad - B), (0, 0))
            sim_out = jnp.pad(sim_out, pad)
            com_out = jnp.pad(com_out, pad)
        bb = b_pad
    else:
        b_pad = B
        bb = _pick_block_b(B, block_b, D1, D2)

    grid = (pl.cdiv(b_pad, bb),)

    cost = pl.CostEstimate(
        flops=2 * b_pad * (D1 + D2) * 6 + 10 * b_pad,
        transcendentals=b_pad,
        bytes_accessed=4 * (b_pad * (D1 + D2) + 3 * b_pad + 8 * (D1 + D2 + 1)),
    )

    out = pl.pallas_call(
        _moef_kernel,
        out_shape=jax.ShapeDtypeStruct((3, b_pad), jnp.float32),
        grid_spec=pltpu.PrefetchScalarGridSpec(
            num_scalar_prefetch=0,
            grid=grid,
            in_specs=[
                pl.BlockSpec((bb, D1), lambda i: (i, 0)),   # sim activations
                pl.BlockSpec((bb, D2), lambda i: (i, 0)),   # com activations
                pl.BlockSpec((8, D1), lambda i: (0, 0)),    # fused W_sim^T
                pl.BlockSpec((8, D2), lambda i: (0, 0)),    # fused W_com^T
                pl.BlockSpec((8, 1), lambda i: (0, 0)),     # fused bias column
            ],
            out_specs=pl.BlockSpec((3, bb), lambda i: (0, i)),
        ),
        compiler_params=pltpu.CompilerParams(
            dimension_semantics=("parallel",)),
        cost_estimate=cost,
    )(sim_out, com_out, wt_sim, wt_com, bias_t)

    return (out[0, :B].reshape(B, 1),
            out[1, :B].reshape(B, 1),
            out[2, :B].reshape(B, 1))


# ---------------------------------------------------------------------------
# Parameter construction / packing (matches the PyTorch module's shapes).
# ---------------------------------------------------------------------------
def init_params(key, sim_dim, com_dim):
    """Synthetic init; same fan-in uniform scheme as torch.nn.Linear."""
    input_dim = sim_dim + com_dim
    ks = jax.random.split(key, 8)

    def lin(kw, kb, fan_in, fan_out):
        bound = 1.0 / np.sqrt(fan_in)
        w = jax.random.uniform(kw, (fan_in, fan_out), jnp.float32, -bound, bound)
        b = jax.random.uniform(kb, (1, fan_out), jnp.float32, -bound, bound)
        return w, b

    gate_w, gate_b = lin(ks[0], ks[1], input_dim, 2)   # nn.Linear(input_dim, 2)
    moe_w, moe_b = lin(ks[2], ks[3], input_dim, 2)     # nn.Linear(input_dim, 2)
    fc1_w, fc1_b = lin(ks[4], ks[5], sim_dim, 1)       # nn.Linear(sim_dim, 1)
    fc2_w, fc2_b = lin(ks[6], ks[7], com_dim, 1)       # nn.Linear(com_dim, 1)
    return (gate_w, gate_b, moe_w, moe_b, fc1_w, fc1_b, fc2_w, fc2_b)


def pack_params(raw_params, sim_dim):
    """Fuse gate/MOE/fc weights into transposed [8, D] slabs + [8, 1] bias.

    Row layout: 0 gate0, 1 gate1, 2 moe0, 3 moe1, 4 fc1, 5 fc2, 6-7 zero pad.
    """
    gate_w, gate_b, moe_w, moe_b, fc1_w, fc1_b, fc2_w, fc2_b = raw_params
    com_dim = gate_w.shape[0] - sim_dim
    sim = slice(0, sim_dim)
    com = slice(sim_dim, None)

    wt_sim = jnp.zeros((8, sim_dim), jnp.float32)
    wt_sim = wt_sim.at[0:2].set(gate_w[sim].T)
    wt_sim = wt_sim.at[2:4].set(moe_w[sim].T)
    wt_sim = wt_sim.at[4:5].set(fc1_w.T)

    wt_com = jnp.zeros((8, com_dim), jnp.float32)
    wt_com = wt_com.at[0:2].set(gate_w[com].T)
    wt_com = wt_com.at[2:4].set(moe_w[com].T)
    wt_com = wt_com.at[5:6].set(fc2_w.T)

    bias_t = jnp.zeros((8, 1), jnp.float32)
    bias_t = bias_t.at[0:2, 0].set(gate_b[0])
    bias_t = bias_t.at[2:4, 0].set(moe_b[0])
    bias_t = bias_t.at[4, 0].set(fc1_b[0, 0])
    bias_t = bias_t.at[5, 0].set(fc2_b[0, 0])
    return (wt_sim, wt_com, bias_t)


def moef_reference(sim_out, com_out, raw_params):
    """Pure-JAX mirror of the PyTorch forward (softmax form)."""
    gate_w, gate_b, moe_w, moe_b, fc1_w, fc1_b, fc2_w, fc2_b = raw_params
    total = jnp.concatenate([sim_out, com_out], axis=-1)
    g = jax.nn.softmax(total @ gate_w + gate_b, axis=-1)
    m = total @ moe_w + moe_b
    y = jnp.sum(g * m, axis=-1, keepdims=True)
    y1 = sim_out @ fc1_w + fc1_b
    y2 = com_out @ fc2_w + fc2_b
    return y, y1, y2


if __name__ == "__main__":
    configs = [
        (16, 32, 48),    # tiny batch, single exact block
        (37, 64, 32),    # tiny non-multiple-of-8 batch -> minimal row padding
        (200, 40, 24),   # batch >= 128 -> 128-wide tiles, ragged final block
    ]
    for B, SIM_DIM, COM_DIM in configs:
        key = jax.random.PRNGKey(0)
        k_sim, k_com, k_par = jax.random.split(key, 3)
        sim_out = jax.random.normal(k_sim, (B, SIM_DIM), jnp.float32)
        com_out = jax.random.normal(k_com, (B, COM_DIM), jnp.float32)

        raw_params = init_params(k_par, SIM_DIM, COM_DIM)
        packed = pack_params(raw_params, SIM_DIM)

        y, y1, y2 = moef_forward(sim_out, com_out, packed)
        jax.block_until_ready((y, y1, y2))

        y_r, y1_r, y2_r = moef_reference(sim_out, com_out, raw_params)
        np.testing.assert_allclose(np.asarray(y), np.asarray(y_r),
                                   rtol=1e-4, atol=1e-5)
        np.testing.assert_allclose(np.asarray(y1), np.asarray(y1_r),
                                   rtol=1e-4, atol=1e-5)
        np.testing.assert_allclose(np.asarray(y2), np.asarray(y2_r),
                                   rtol=1e-4, atol=1e-5)

    print("KERNEL_OK")
</pallas_src>

<mosaic_0001>
module attributes {stable_mosaic.version = 11 : i64} {
  func.func @_moef_kernel(%arg0: i32, %arg1: memref<16x32xf32, #tpu.memory_space<vmem>>, %arg2: memref<16x48xf32, #tpu.memory_space<vmem>>, %arg3: memref<8x32xf32, #tpu.memory_space<vmem>>, %arg4: memref<8x48xf32, #tpu.memory_space<vmem>>, %arg5: memref<8x1xf32, #tpu.memory_space<vmem>>, %arg6: memref<3x16xf32, #tpu.memory_space<vmem>>) attributes {dimension_semantics = [#tpu.dimension_semantics<parallel>], iteration_bounds = array<i64: 1>, scalar_prefetch = 0 : i64, scratch_operands = 0 : i64, tpu.core_type = #tpu.core_type<tc>, window_params = [{transform_indices = @transform_0, window_bounds = array<i64: 16, 32>}, {transform_indices = @transform_1, window_bounds = array<i64: 16, 48>}, {pipeline_mode = #tpu.pipeline_mode<synchronous>, transform_indices = @transform_2, window_bounds = array<i64: 8, 32>}, {pipeline_mode = #tpu.pipeline_mode<synchronous>, transform_indices = @transform_3, window_bounds = array<i64: 8, 48>}, {pipeline_mode = #tpu.pipeline_mode<synchronous>, transform_indices = @transform_4, window_bounds = array<i64: 8, 1>}, {transform_indices = @transform_5, window_bounds = array<i64: 3, 16>}]} {
    %c0 = arith.constant 0 : index
    %c0_0 = arith.constant 0 : index
    %0 = vector.load %arg3[%c0, %c0_0] : memref<8x32xf32, #tpu.memory_space<vmem>>, vector<8x32xf32>
    %c0_1 = arith.constant 0 : index
    %c0_2 = arith.constant 0 : index
    %1 = vector.load %arg1[%c0_1, %c0_2] : memref<16x32xf32, #tpu.memory_space<vmem>>, vector<16x32xf32>
    %cst = arith.constant dense<0.000000e+00> : vector<8x16xf32>
    %2 = tpu.matmul %0, %1, %cst {dimension_numbers = #tpu.dot_dimension_numbers<[1], [1], [0], [0], [0, 0, 1, 0], [], []>} : vector<8x32xf32>, vector<16x32xf32>, vector<8x16xf32> -> vector<8x16xf32>
    %c0_3 = arith.constant 0 : index
    %c0_4 = arith.constant 0 : index
    %3 = vector.load %arg4[%c0_3, %c0_4] : memref<8x48xf32, #tpu.memory_space<vmem>>, vector<8x48xf32>
    %c0_5 = arith.constant 0 : index
    %c0_6 = arith.constant 0 : index
    %4 = vector.load %arg2[%c0_5, %c0_6] : memref<16x48xf32, #tpu.memory_space<vmem>>, vector<16x48xf32>
    %cst_7 = arith.constant dense<0.000000e+00> : vector<8x16xf32>
    %5 = tpu.matmul %3, %4, %cst_7 {dimension_numbers = #tpu.dot_dimension_numbers<[1], [1], [0], [0], [0, 0, 1, 0], [], []>} : vector<8x48xf32>, vector<16x48xf32>, vector<8x16xf32> -> vector<8x16xf32>
    %6 = arith.addf %2, %5 : vector<8x16xf32>
    %c0_8 = arith.constant 0 : index
    %c0_9 = arith.constant 0 : index
    %7 = vector.load %arg5[%c0_8, %c0_9] : memref<8x1xf32, #tpu.memory_space<vmem>>, vector<8x1xf32>
    %8 = vector.broadcast %7 : vector<8x1xf32> to vector<8x16xf32>
    %9 = arith.addf %6, %8 : vector<8x16xf32>
    %10 = vector.extract_strided_slice %9 {offsets = [0, 0], sizes = [1, 16], strides = [1, 1]} : vector<8x16xf32> to vector<1x16xf32>
    %11 = vector.extract_strided_slice %9 {offsets = [1, 0], sizes = [1, 16], strides = [1, 1]} : vector<8x16xf32> to vector<1x16xf32>
    %12 = vector.extract_strided_slice %9 {offsets = [2, 0], sizes = [1, 16], strides = [1, 1]} : vector<8x16xf32> to vector<1x16xf32>
    %13 = vector.extract_strided_slice %9 {offsets = [3, 0], sizes = [1, 16], strides = [1, 1]} : vector<8x16xf32> to vector<1x16xf32>
    %14 = arith.subf %11, %10 : vector<1x16xf32>
    %15 = math.exp %14 : vector<1x16xf32>
    %cst_10 = arith.constant 1.000000e+00 : f32
    %16 = vector.broadcast %cst_10 : f32 to vector<1x16xf32>
    %17 = arith.addf %16, %15 : vector<1x16xf32>
    %cst_11 = arith.constant 1.000000e+00 : f32
    %18 = vector.broadcast %cst_11 : f32 to vector<1x16xf32>
    %19 = arith.divf %18, %17 : vector<1x16xf32>
    %20 = arith.subf %12, %13 : vector<1x16xf32>
    %21 = arith.mulf %19, %20 : vector<1x16xf32>
    %22 = arith.addf %21, %13 : vector<1x16xf32>
    %c0_12 = arith.constant 0 : index
    %c0_13 = arith.constant 0 : index
    %23 = vector.load %arg6[%c0_12, %c0_13] : memref<3x16xf32, #tpu.memory_space<vmem>>, vector<1x16xf32>
    tpu.vector_store %arg6[%c0_12, %c0_13], %22 {strides = array<i32>} : memref<3x16xf32, #tpu.memory_space<vmem>>, vector<1x16xf32>,
    %24 = vector.extract_strided_slice %9 {offsets = [4, 0], sizes = [2, 16], strides = [1, 1]} : vector<8x16xf32> to vector<2x16xf32>
    %c1 = arith.constant 1 : index
    %c0_14 = arith.constant 0 : index
    %25 = vector.load %arg6[%c1, %c0_14] : memref<3x16xf32, #tpu.memory_space<vmem>>, vector<2x16xf32>
    tpu.vector_store %arg6[%c1, %c0_14], %24 {strides = array<i32>} : memref<3x16xf32, #tpu.memory_space<vmem>>, vector<2x16xf32>,
    return
  }
  func.func @transform_0(%arg0: i32) -> (i32, i32) {
    %c0_i32 = arith.constant 0 : i32
    %c0_i32_0 = arith.constant 0 : i32
    return %arg0, %c0_i32 : i32, i32
  }
  func.func @transform_1(%arg0: i32) -> (i32, i32) {
    %c0_i32 = arith.constant 0 : i32
    %c0_i32_0 = arith.constant 0 : i32
    return %arg0, %c0_i32 : i32, i32
  }
  func.func @transform_2(%arg0: i32) -> (i32, i32) {
    %c0_i32 = arith.constant 0 : i32
    %c0_i32_0 = arith.constant 0 : i32
    %c0_i32_1 = arith.constant 0 : i32
    return %c0_i32, %c0_i32_0 : i32, i32
  }
  func.func @transform_3(%arg0: i32) -> (i32, i32) {
    %c0_i32 = arith.constant 0 : i32
    %c0_i32_0 = arith.constant 0 : i32
    %c0_i32_1 = arith.constant 0 : i32
    return %c0_i32, %c0_i32_0 : i32, i32
  }
  func.func @transform_4(%arg0: i32) -> (i32, i32) {
    %c0_i32 = arith.constant 0 : i32
    %c0_i32_0 = arith.constant 0 : i32
    %c0_i32_1 = arith.constant 0 : i32
    return %c0_i32, %c0_i32_0 : i32, i32
  }
  func.func @transform_5(%arg0: i32) -> (i32, i32) {
    %c0_i32 = arith.constant 0 : i32
    %c0_i32_0 = arith.constant 0 : i32
    return %c0_i32, %arg0 : i32, i32
  }
}

</mosaic_0001>

<llo_original>
// kernel: moef_forward.1
$region0: #{moef_forward.1}
  #allocation0 [shape = 'u32[]', space=smem, size = 0x4, offset = 0x4, fixed_abs, tag = 'smem constant byte address 0x4 - core index']
  #allocation1 [shape = 'u32[144,128]{1,0:T(1,128)}', space=vmem, size = 0x12000, scoped, tag = 'internal scratch']
  %s0 = inlined_call_operand.hbm [shape: f32[16,32], index: 0, kind: input, shape index: {}]
  %s1 = inlined_call_operand.hbm [shape: f32[16,48], index: 1, kind: input, shape index: {}]
  %s2 = inlined_call_operand.vmem [shape: f32[8,32], index: 2, kind: input, shape index: {}]
  %s3 = inlined_call_operand.hbm [shape: f32[8,48], index: 3, kind: input, shape index: {}]
  %s4 = inlined_call_operand.vmem [shape: f32[8,1], index: 4, kind: input, shape index: {}]
  %s5 = inlined_call_operand.vmem [shape: f32[3,16], index: 5, kind: output, shape index: {}]
  %s6 = sld [smem:[#allocation0]]
  $region42: #{moef_forward.1} parent=0
    _
  %s8 = ssub.s32 1, %s6
  %s9 = scalar_select 0, %s8, %s6
  $region1: #{moef_forward.1} parent=0
    #allocation2 [shape = 'u8[8192]{0}', space=vmem, size = 0x2000, scoped, tag = 'input window, operand 0, single buffered']
    #allocation3 [shape = 's32[1]{0}', space=sflag, size = 0x4, scoped, tag = 'scoped memory for moef_forward.1']
    #allocation4 [shape = 'u8[8192]{0}', space=vmem, size = 0x2000, scoped, tag = 'input window, operand 1, single buffered']
    #allocation5 [shape = 's32[1]{0}', space=sflag, size = 0x4, scoped, tag = 'scoped memory for moef_forward.1']
    #allocation6 [shape = 'u8[4096]{0}', space=vmem, size = 0x1000, scoped, tag = 'input window, operand 3, single buffered']
    %10 = vsyncpa [#allocation3], 0
    %11 = vsyncpa [#allocation5], 0
    // Predicated region
    $region2: #{moef_forward.1} parent=1 // pred_check
      _
    $region3: #{moef_forward.1} parent=1 // pred_check_branch
      %13 = sbr.rel (0) target = $region5
    $region4: #{moef_forward.1} parent=1 // pred_region
      %s15 = ssub.s32 256, 256
      %16 = vsyncadd [#allocation3], %s15
      %s17 = sshll.u32 [#allocation2], 4
      %s18 = int_to_ptr.vmem [resolvable:$true] %s17
      %23 = dma.hbm_to_vmem [thread:$0]  %s0, 256, %s18, [#allocation3], 128, 128, 8
    $region5: #{moef_forward.1} parent=1 // pred_fallthru
      _
    // Predicated region
    $region6: #{moef_forward.1} parent=1 // pred_check
      _
    $region7: #{moef_forward.1} parent=1 // pred_check_branch
      %25 = sbr.rel (0) target = $region9
    $region8: #{moef_forward.1} parent=1 // pred_region
      %s27 = ssub.s32 256, 256
      %28 = vsyncadd [#allocation5], %s27
      %s29 = sshll.u32 [#allocation4], 4
      %s30 = int_to_ptr.vmem [resolvable:$true] %s29
      %35 = dma.hbm_to_vmem [thread:$0]  %s1, 256, %s30, [#allocation5], 128, 128, 8
    $region9: #{moef_forward.1} parent=1 // pred_fallthru
      _
    // Predicated region
    $region10: #{moef_forward.1} parent=1 // pred_check
      _
    $region11: #{moef_forward.1} parent=1 // pred_check_branch
      %37 = sbr.rel (0) target = $region13
    $region12: #{moef_forward.1} parent=1 // pred_region
      _
    $region13: #{moef_forward.1} parent=1 // pred_fallthru
      _
    // Predicated region
    $region14: #{moef_forward.1} parent=1 // pred_check
      _
    $region15: #{moef_forward.1} parent=1 // pred_check_branch
      %39 = sbr.rel (0) target = $region17
    $region16: #{moef_forward.1} parent=1 // pred_region
      %s41 = ssub.s32 128, 128
      %42 = vsyncadd [#allocation5], %s41
      %s44 = sshll.u32 [#allocation6], 4
      %s45 = int_to_ptr.vmem [resolvable:$true] %s44
      %47 = dma.hbm_to_vmem [thread:$0]  %s3, 128, %s45, [#allocation5]
    $region17: #{moef_forward.1} parent=1 // pred_fallthru
      _
    // Predicated region
    $region18: #{moef_forward.1} parent=1 // pred_check
      _
    $region19: #{moef_forward.1} parent=1 // pred_check_branch
      %49 = sbr.rel (0) target = $region21
    $region20: #{moef_forward.1} parent=1 // pred_region
      _
    $region21: #{moef_forward.1} parent=1 // pred_fallthru
      _
    // Predicated region
    $region22: #{moef_forward.1} parent=1 // pred_check
      _
    $region23: #{moef_forward.1} parent=1 // pred_check_branch
      %51 = sbr.rel (0) target = $region25
    $region24: #{moef_forward.1} parent=1 // pred_region
      %52 = dma.done [#allocation3], 256
    $region25: #{moef_forward.1} parent=1 // pred_fallthru
      _
    // Predicated region
    $region26: #{moef_forward.1} parent=1 // pred_check
      _
    $region27: #{moef_forward.1} parent=1 // pred_check_branch
      %54 = sbr.rel (0) target = $region29
    $region28: #{moef_forward.1} parent=1 // pred_region
      %55 = dma.done [#allocation5], 256
    $region29: #{moef_forward.1} parent=1 // pred_fallthru
      _
    // Predicated region
    $region30: #{moef_forward.1} parent=1 // pred_check
      _
    $region31: #{moef_forward.1} parent=1 // pred_check_branch
      %57 = sbr.rel (0) target = $region33
    $region32: #{moef_forward.1} parent=1 // pred_region
      %58 = dma.done [#allocation5], 128
    $region33: #{moef_forward.1} parent=1 // pred_fallthru
      _
    %v59 = vld [vmem:[%s2] sm:$0xff]
    %v60 = vld [vmem:[#allocation2] sm:$0xff]
    %v61 = vld [vmem:[#allocation2 + $0x8] sm:$0xff]
    %v62 = vld [vmem:[#allocation6] sm:$0xff]
    %v63 = vld [vmem:[#allocation4] sm:$0xff]
    %v64 = vld [vmem:[#allocation4 + $0x8] sm:$0xff]
    %vm65 = vcmask 392192
    %v67 = vsel %vm65, %v62, 0
    %v70 = vsel %vm65, %v63, 0
    %v73 = vsel %vm65, %v64, 0
    %75 = vmatprep.subr.mxu0 0.0
    %76 = vmatpush1.xpose.msra.mxu0 0.0
    %77 = vmatprep.subr.mxu0 0.0
    %78 = vmatpush1.xpose.msra.mxu0 0.0
    %79 = vmatprep.subr.mxu0 0.0
    %80 = vmatpush1.xpose.msra.mxu0 0.0
    %81 = vmatprep.subr.mxu0 0.0
    %82 = vmatpush1.xpose.msra.mxu0 0.0
    %83 = vmatprep.subr.mxu0 0.0
    %84 = vmatpush1.xpose.msra.mxu0 0.0
    %85 = vmatprep.subr.mxu0 0.0
    %86 = vmatpush1.xpose.msra.mxu0 0.0
    %87 = vmatprep.subr.mxu0 0.0
    %88 = vmatpush1.xpose.msra.mxu0 0.0
    %89 = vmatprep.subr.mxu0 0.0
    %90 = vmatpush1.xpose.msra.mxu0 0.0
    %91 = vmatprep.subr.mxu0 0.0
    %92 = vmatpush1.xpose.msra.mxu0 0.0
    %93 = vmatprep.subr.mxu0 0.0
    %94 = vmatpush1.xpose.msra.mxu0 0.0
    %95 = vmatprep.subr.mxu0 0.0
    %96 = vmatpush1.xpose.msra.mxu0 0.0
    %97 = vmatprep.subr.mxu0 0.0
    %98 = vmatpush1.xpose.msra.mxu0 0.0
    %99 = vmatprep.subr.mxu0 0.0
    %100 = vmatpush1.xpose.msra.mxu0 0.0
    %101 = vmatprep.subr.mxu0 0.0
    %102 = vmatpush1.xpose.msra.mxu0 0.0
    %103 = vmatprep.subr.mxu0 0.0
    %104 = vmatpush1.xpose.msra.mxu0 %v73
    %105 = vmatprep.subr.mxu0 0.0
    %106 = vmatpush1.xpose.msra.mxu0 %v70
    %107 = vmatprep.subr.mxu0 0.0
    %108 = vmatpush2.xpose.msra.mxu0 0.0
    %109 = vmatprep.subr.mxu0 0.0
    %110 = vmatpush2.xpose.msra.mxu0 0.0
    %111 = vmatprep.subr.mxu0 0.0
    %112 = vmatpush2.xpose.msra.mxu0 0.0
    %113 = vmatprep.subr.mxu0 0.0
    %114 = vmatpush2.xpose.msra.mxu0 0.0
    %115 = vmatprep.subr.mxu0 0.0
    %116 = vmatpush2.xpose.msra.mxu0 0.0
    %117 = vmatprep.subr.mxu0 0.0
    %118 = vmatpush2.xpose.msra.mxu0 0.0
    %119 = vmatprep.subr.mxu0 0.0
    %120 = vmatpush2.xpose.msra.mxu0 0.0
    %121 = vmatprep.subr.mxu0 0.0
    %122 = vmatpush2.xpose.msra.mxu0 0.0
    %123 = vmatprep.subr.mxu0 0.0
    %124 = vmatpush2.xpose.msra.mxu0 0.0
    %125 = vmatprep.subr.mxu0 0.0
    %126 = vmatpush2.xpose.msra.mxu0 0.0
    %127 = vmatprep.subr.mxu0 0.0
    %128 = vmatpush2.xpose.msra.mxu0 0.0
    %129 = vmatprep.subr.mxu0 0.0
    %130 = vmatpush2.xpose.msra.mxu0 0.0
    %131 = vmatprep.subr.mxu0 0.0
    %132 = vmatpush2.xpose.msra.mxu0 0.0
    %133 = vmatprep.subr.mxu0 0.0
    %134 = vmatpush2.xpose.msra.mxu0 0.0
    %135 = vmatprep.subr.mxu0 0.0
    %136 = vmatpush2.xpose.msra.mxu0 0.0
    %137 = vmatprep.subr.mxu0 0.0
    %138 = vmatpush2.xpose.msra.mxu0 0.0
    %139 = vmatprep.mubr.f32.mxu0 0.0
    %140 = vmatmul.mubr.f32.gmra.mxu0 %v67
    %v141 = vpop.f32.mrf.mxu0
    %v142 = vadd.f32 0.0, %v141
    %v143 = vpop.f32.mrf.mxu0
    %144 = vdwg.mxu0
    %vm145 = vcmask 261120
    %v147 = vsel %vm145, %v59, 0
    %v150 = vsel %vm145, %v60, 0
    %v153 = vsel %vm145, %v61, 0
    %155 = vmatprep.subr.mxu0 0.0
    %156 = vmatpush1.xpose.msra.mxu0 0.0
    %157 = vmatprep.subr.mxu0 0.0
    %158 = vmatpush1.xpose.msra.mxu0 0.0
    %159 = vmatprep.subr.mxu0 0.0
    %160 = vmatpush1.xpose.msra.mxu0 0.0
    %161 = vmatprep.subr.mxu0 0.0
    %162 = vmatpush1.xpose.msra.mxu0 0.0
    %163 = vmatprep.subr.mxu0 0.0
    %164 = vmatpush1.xpose.msra.mxu0 0.0
    %165 = vmatprep.subr.mxu0 0.0
    %166 = vmatpush1.xpose.msra.mxu0 0.0
    %167 = vmatprep.subr.mxu0 0.0
    %168 = vmatpush1.xpose.msra.mxu0 0.0
    %169 = vmatprep.subr.mxu0 0.0
    %170 = vmatpush1.xpose.msra.mxu0 0.0
    %171 = vmatprep.subr.mxu0 0.0
    %172 = vmatpush1.xpose.msra.mxu0 0.0
    %173 = vmatprep.subr.mxu0 0.0
    %174 = vmatpush1.xpose.msra.mxu0 0.0
    %175 = vmatprep.subr.mxu0 0.0
    %176 = vmatpush1.xpose.msra.mxu0 0.0
    %177 = vmatprep.subr.mxu0 0.0
    %178 = vmatpush1.xpose.msra.mxu0 0.0
    %179 = vmatprep.subr.mxu0 0.0
    %180 = vmatpush1.xpose.msra.mxu0 0.0
    %181 = vmatprep.subr.mxu0 0.0
    %182 = vmatpush1.xpose.msra.mxu0 0.0
    %183 = vmatprep.subr.mxu0 0.0
    %184 = vmatpush1.xpose.msra.mxu0 %v153
    %185 = vmatprep.subr.mxu0 0.0
    %186 = vmatpush1.xpose.msra.mxu0 %v150
    %187 = vmatprep.subr.mxu0 0.0
    %188 = vmatpush2.xpose.msra.mxu0 0.0
    %189 = vmatprep.subr.mxu0 0.0
    %190 = vmatpush2.xpose.msra.mxu0 0.0
    %191 = vmatprep.subr.mxu0 0.0
    %192 = vmatpush2.xpose.msra.mxu0 0.0
    %193 = vmatprep.subr.mxu0 0.0
    %194 = vmatpush2.xpose.msra.mxu0 0.0
    %195 = vmatprep.subr.mxu0 0.0
    %196 = vmatpush2.xpose.msra.mxu0 0.0
    %197 = vmatprep.subr.mxu0 0.0
    %198 = vmatpush2.xpose.msra.mxu0 0.0
    %199 = vmatprep.subr.mxu0 0.0
    %200 = vmatpush2.xpose.msra.mxu0 0.0
    %201 = vmatprep.subr.mxu0 0.0
    %202 = vmatpush2.xpose.msra.mxu0 0.0
    %203 = vmatprep.subr.mxu0 0.0
    %204 = vmatpush2.xpose.msra.mxu0 0.0
    %205 = vmatprep.subr.mxu0 0.0
    %206 = vmatpush2.xpose.msra.mxu0 0.0
    %207 = vmatprep.subr.mxu0 0.0
    %208 = vmatpush2.xpose.msra.mxu0 0.0
    %209 = vmatprep.subr.mxu0 0.0
    %210 = vmatpush2.xpose.msra.mxu0 0.0
    %211 = vmatprep.subr.mxu0 0.0
    %212 = vmatpush2.xpose.msra.mxu0 0.0
    %213 = vmatprep.subr.mxu0 0.0
    %214 = vmatpush2.xpose.msra.mxu0 0.0
    %215 = vmatprep.subr.mxu0 0.0
    %216 = vmatpush2.xpose.msra.mxu0 0.0
    %217 = vmatprep.subr.mxu0 0.0
    %218 = vmatpush2.xpose.msra.mxu0 0.0
    %219 = vmatprep.mubr.f32.mxu0 0.0
    %220 = vmatmul.mubr.f32.gmra.mxu0 %v147
    %v221 = vpop.f32.mrf.mxu0
    %v222 = vadd.f32 %v142, %v221
    %v223 = vpop.f32.mrf.mxu0
    %224 = vdwg.mxu0
    %v225 = vld [vmem:[%s4] sm:$0xff]
    %227 = vset.pattern.permute.xlu0 0
    %228 = vperm.xlu0 %227, %v225
    %v229 = vpop.permute.xlu0 %228
    %v231 = vadd.f32 %v222, %v229
    %v233 = vrot.slane %v231, 7
    %v235 = vsub.f32 %v231, %v233
    %v236 = vmul.f32 %v235, 1.442695
    %v237 = vpow.pop %v236
    %v238 = vadd.f32 %v237, 1.0
    %v239 = vrcp.pop %v238
    %v240 = vmul.f32 1.0, %v239
    %v241 = vrot.slane %v231, 1
    %v243 = vsub.f32 %v231, %v241
    %v245 = vrot.slane %v243, 1
    %v247 = vmul.f32 %v240, %v245
    %v248 = vrot.slane %v231, 2
    %v250 = vadd.f32 %v247, %v248
    %vm251 = vcmask 123905
    %252 = vst.msk [vmem:[%s5 - $0x1] sm:$0x2] %vm251, %v250
    %vm253 = vcmask 128004
    %254 = vst.msk [vmem:[%s5 - $0x3] sm:$0x30] %vm253, %v231
    // Predicated region
    $region34: #{moef_forward.1} parent=1 // pred_check
      _
    $region35: #{moef_forward.1} parent=1 // pred_check_branch
      %256 = sbr.rel (0) target = $region37
    $region36: #{moef_forward.1} parent=1 // pred_region
      _
    $region37: #{moef_forward.1} parent=1 // pred_fallthru
      _
    // Predicated region
    $region38: #{moef_forward.1} parent=1 // pred_check
      _
    $region39: #{moef_forward.1} parent=1 // pred_check_branch
      %258 = sbr.rel (0) target = $region41
    $region40: #{moef_forward.1} parent=1 // pred_region
      _
    $region41: #{moef_forward.1} parent=1 // pred_fallthru
      _
    %259 = vsyncpa [#allocation3], 1
    %260 = vsyncpa [#allocation5], 1

</llo_original>
